<compile_context>
chip_gen: v7x
topology: tpu7x:2x2x1
jax: 0.10.0
libtpu: 0.0.40
codegen_flags: <defaults>
</compile_context>

<pallas_src>
import functools

import jax
import jax.numpy as jnp
from jax.experimental import pallas as pl
from jax.experimental.pallas import tpu as pltpu

_LANE = 128


def _round_up(x, m):
    return (x + m - 1) // m * m


def _gp_partial_sumsq_kernel(g_ref, o_ref, *, rows_tile, r_total, ragged):
    """Lane-dense per-sample partial sum of squares of one (B, rows_tile, 128) tile.

    Writes a (B, 128) f32 per-lane partial; lanes and tiles are combined in the
    JAX epilogue (no width-1 masked stores, no per-tile cross-lane reduce).
    """
    g = g_ref[...]
    if g.dtype != jnp.float32:
        g = g.astype(jnp.float32)

    if not ragged:
        o_ref[...] = jnp.sum(g * g, axis=1)
    else:
        t = pl.program_id(0)
        last = pl.num_programs(0) - 1

        @pl.when(t != last)
        def _():
            # Non-ragged tiles: pure multiply-add stream, no mask cost.
            o_ref[...] = jnp.sum(g * g, axis=1)

        @pl.when(t == last)
        def _():
            # Only the ragged final tile pays for iota + compare + select.
            # Mask BEFORE squaring so OOB garbage (incl. NaN) cannot leak in.
            row_ids = t * rows_tile + jax.lax.broadcasted_iota(
                jnp.int32, g.shape, 1)
            gm = jnp.where(row_ids < r_total, g, 0.0)
            o_ref[...] = jnp.sum(gm * gm, axis=1)


@functools.partial(jax.jit, static_argnames=("force_pallas",))
def gradient_penalty_from_grad(grad_flat, force_pallas=False):
    """grad_flat: (B, F) flattened per-sample gradients (any float dtype).

    Returns the scalar f32 loss  mean_b( (||grad_b||_2 - 1)^2 ).
    """
    B, F = grad_flat.shape
    itemsize = jnp.dtype(grad_flat.dtype).itemsize
    total_bytes = B * F * itemsize

    # Paths the Pallas kernel cannot beat:
    #   * non-128-aligned F: a pad / slice re-layout would add an extra HBM
    #     pass larger than the kernel itself, and
    #   * tiny inputs, where pallas_call fixed cost dominates.
    # A fused XLA reduction is one HBM pass either way.
    use_pallas = (F % _LANE == 0) and (force_pallas or total_bytes >= (1 << 20))

    def _jax_fallback():
        g32 = grad_flat.astype(jnp.float32)
        ss = jnp.sum(g32 * g32, axis=1)
        return jnp.mean((jnp.sqrt(ss) - 1.0) ** 2)

    if not use_pallas:
        return _jax_fallback()

    R = F // _LANE
    g3 = grad_flat.reshape(B, R, _LANE)          # metadata-only reshape

    # Sublane granule of the input dtype: 8 (f32) / 16 (bf16) / 32 (int8/fp8).
    granule = 8 * 4 // itemsize if itemsize in (1, 2, 4) else 8

    # ~2 MiB blocks in the input dtype: big enough to sit on the HBM roofline,
    # small enough (x2 double buffer + f32 cast temp) for v7x's 32 MiB default
    # scoped VMEM (v5e/v6e have more headroom).  Cap rows_tile so the grid has
    # at least ~4 steps: DMA overlaps VPU compute and both v7x TensorCores get
    # work even for moderate F.
    target_block_bytes = 2 * 1024 * 1024
    max_rows = max(granule,
                   (target_block_bytes // (B * _LANE * itemsize))
                   // granule * granule)
    rows_tile = min(max_rows,
                    max(granule, _round_up(pl.cdiv(R, 4), granule)))
    rows_tile = min(rows_tile, _round_up(R, granule))
    n_tiles = pl.cdiv(R, rows_tile)
    ragged = (R % rows_tile) != 0

    # Robustness guard for pathological batch sizes: if even a minimum-height
    # block (double-buffered input + f32 temp) would blow the scoped VMEM
    # budget, use the fused XLA reduction instead of risking a compile failure.
    block_in_bytes = B * rows_tile * _LANE * itemsize
    block_f32_bytes = B * rows_tile * _LANE * 4
    if 2 * block_in_bytes + block_f32_bytes > 24 * 1024 * 1024:
        return _jax_fallback()

    kernel = functools.partial(
        _gp_partial_sumsq_kernel,
        rows_tile=rows_tile, r_total=R, ragged=ragged)

    partials = pl.pallas_call(
        kernel,
        out_shape=jax.ShapeDtypeStruct((n_tiles, B, _LANE), jnp.float32),
        grid_spec=pltpu.PrefetchScalarGridSpec(
            num_scalar_prefetch=0,
            grid=(n_tiles,),
            in_specs=[pl.BlockSpec((B, rows_tile, _LANE),
                                   lambda t: (0, t, 0))],
            out_specs=pl.BlockSpec((None, B, _LANE), lambda t: (t, 0, 0)),
        ),
        compiler_params=pltpu.CompilerParams(
            dimension_semantics=("parallel",)),
        cost_estimate=pl.CostEstimate(
            flops=2 * B * F,
            transcendentals=0,
            bytes_accessed=B * F * itemsize + n_tiles * B * _LANE * 4),
    )(g3)

    # Tiny epilogue in plain JAX: combine per-tile/per-lane partials, sqrt, mean.
    ss = jnp.sum(partials, axis=(0, 2))          # (B,)
    norm = jnp.sqrt(ss)
    return jnp.mean((norm - 1.0) ** 2)


def gradient_penalty_loss(critic_fn, interp, force_pallas=False):
    """Full GradientPenaltyLoss.forward.

    torch.autograd.grad(outputs=interp_crit, inputs=interp, grad_outputs=ones,
    only_inputs=True) == jax.vjp with a ones cotangent.
    """
    # TODO(synk): the autograd.grad over the external critic graph has no
    # in-kernel Pallas equivalent; it is computed with jax.vjp here.
    interp_crit, vjp_fn = jax.vjp(critic_fn, interp)
    grad_outputs = jnp.ones_like(interp_crit)    # get_grad_outputs(...)
    (grad_interp,) = vjp_fn(grad_outputs)
    grad_flat = grad_interp.reshape(grad_interp.shape[0], -1)  # view(B, -1)
    return gradient_penalty_from_grad(grad_flat, force_pallas=force_pallas)


if __name__ == "__main__":
    # Small shapes consistent with an NCHW image-critic setup.
    B, C, H, W = 2, 4, 16, 16
    key = jax.random.PRNGKey(0)
    k1, k2, k3 = jax.random.split(key, 3)

    interp = jax.random.normal(k1, (B, C, H, W), dtype=jnp.float32)

    # Deterministic synthetic "critic": flatten -> linear -> scalar per sample.
    w = (jax.random.normal(k2, (C * H * W, 1), dtype=jnp.float32)
         / jnp.sqrt(jnp.float32(C * H * W)))

    def critic_fn(x):
        return x.reshape(x.shape[0], -1) @ w     # (B, 1) critic scores

    # Force the Pallas kernel even at demo size (the size-based dispatcher
    # would otherwise pick the fused-XLA fast path for 8 KiB of gradients).
    loss = gradient_penalty_loss(critic_fn, interp, force_pallas=True)
    loss = jax.block_until_ready(loss)

    # Reference check in plain JAX.
    _, vjp_fn = jax.vjp(critic_fn, interp)
    (g_ref,) = vjp_fn(jnp.ones((B, 1), jnp.float32))
    g_ref = g_ref.reshape(B, -1)
    ref = jnp.mean((jnp.linalg.norm(g_ref, axis=1) - 1.0) ** 2)
    assert jnp.allclose(loss, ref, rtol=1e-5, atol=1e-6), (loss, ref)

    # Second check: multi-tile grid with a ragged last tile (pl.when mask path).
    g2 = jax.random.normal(k3, (2, 37 * 128), dtype=jnp.float32)
    loss2 = jax.block_until_ready(
        gradient_penalty_from_grad(g2, force_pallas=True))
    ref2 = jnp.mean((jnp.linalg.norm(g2, axis=1) - 1.0) ** 2)
    assert jnp.allclose(loss2, ref2, rtol=1e-5, atol=1e-5), (loss2, ref2)

    print("KERNEL_OK")
</pallas_src>

<mosaic_0001>
module attributes {stable_mosaic.version = 11 : i64} {
  func.func @_gp_partial_sumsq_kernel(%arg0: i32, %arg1: memref<2x8x128xf32, #tpu.memory_space<vmem>>, %arg2: memref<1x2x128xf32, #tpu.memory_space<vmem>>) attributes {dimension_semantics = [#tpu.dimension_semantics<parallel>], iteration_bounds = array<i64: 1>, scalar_prefetch = 0 : i64, scratch_operands = 0 : i64, tpu.core_type = #tpu.core_type<tc>, window_params = [{transform_indices = @transform_0, window_bounds = array<i64: 2, 8, 128>}, {transform_indices = @transform_1, window_bounds = array<i64: 1, 2, 128>}]} {
    %c0 = arith.constant 0 : index
    %c0_0 = arith.constant 0 : index
    %c0_1 = arith.constant 0 : index
    %0 = vector.load %arg1[%c0, %c0_0, %c0_1] : memref<2x8x128xf32, #tpu.memory_space<vmem>>, vector<2x8x128xf32>
    %1 = arith.mulf %0, %0 : vector<2x8x128xf32>
    %cst = arith.constant dense<0.000000e+00> : vector<2x128xf32>
    %2 = vector.multi_reduction <add>, %1, %cst [1] : vector<2x8x128xf32> to vector<2x128xf32>
    %c0_2 = arith.constant 0 : index
    %c0_3 = arith.constant 0 : index
    %c0_4 = arith.constant 0 : index
    %3 = vector.load %arg2[%c0_2, %c0_3, %c0_4] : memref<1x2x128xf32, #tpu.memory_space<vmem>>, vector<1x2x128xf32>
    %4 = vector.shape_cast %3 : vector<1x2x128xf32> to vector<2x128xf32>
    %5 = vector.shape_cast %2 : vector<2x128xf32> to vector<1x2x128xf32>
    tpu.vector_store %arg2[%c0_2, %c0_3, %c0_4], %5 {strides = array<i32>} : memref<1x2x128xf32, #tpu.memory_space<vmem>>, vector<1x2x128xf32>,
    return
  }
  func.func @transform_0(%arg0: i32) -> (i32, i32, i32) {
    %c0_i32 = arith.constant 0 : i32
    %c0_i32_0 = arith.constant 0 : i32
    %c0_i32_1 = arith.constant 0 : i32
    return %c0_i32, %arg0, %c0_i32_0 : i32, i32, i32
  }
  func.func @transform_1(%arg0: i32) -> (i32, i32, i32) {
    %c0_i32 = arith.constant 0 : i32
    %c0_i32_0 = arith.constant 0 : i32
    %c0_i32_1 = arith.constant 0 : i32
    return %arg0, %c0_i32, %c0_i32_0 : i32, i32, i32
  }
}

</mosaic_0001>

<llo_original>
// kernel: gradient_penalty_from_grad.1
$region0: #{gradient_penalty_from_grad.1}
  #allocation0 [shape = 'u32[]', space=smem, size = 0x4, offset = 0x4, fixed_abs, tag = 'smem constant byte address 0x4 - core index']
  #allocation1 [shape = 'u32[144,128]{1,0:T(1,128)}', space=vmem, size = 0x12000, scoped, tag = 'internal scratch']
  %s0 = inlined_call_operand.vmem [shape: f32[2,8,128], index: 0, kind: input, shape index: {}]
  %s1 = inlined_call_operand.vmem [shape: f32[1,2,128], index: 1, kind: output, shape index: {}]
  %s2 = sld [smem:[#allocation0]]
  $region14: #{gradient_penalty_from_grad.1} parent=0
    _
  %s4 = ssub.s32 1, %s2
  %s5 = scalar_select 0, %s4, %s2
  // Predicated region
  $region2: #{gradient_penalty_from_grad.1} parent=0 // pred_check
    _
  $region3: #{gradient_penalty_from_grad.1} parent=0 // pred_check_branch
    %7 = sbr.rel (0) target = $region5
  $region4: #{gradient_penalty_from_grad.1} parent=0 // pred_region
    _
  $region5: #{gradient_penalty_from_grad.1} parent=0 // pred_fallthru
    _
  %v8 = vld [vmem:[%s0] sm:$0xff]
  %v9 = vld [vmem:[%s0 + $0x8] sm:$0xff]
  %v10 = vmul.f32 %v8, %v8
  %v11 = vmul.f32 %v9, %v9
  %v12 = vrot.slane %v10, 4
  %v13 = vadd.f32 %v10, %v12
  %v14 = vrot.slane %v13, 2
  %v15 = vadd.f32 %v13, %v14
  %v16 = vrot.slane %v15, 1
  %v17 = vadd.f32 %v15, %v16
  %v18 = vrot.slane %v11, 4
  %v19 = vadd.f32 %v11, %v18
  %v20 = vrot.slane %v19, 2
  %v21 = vadd.f32 %v19, %v20
  %v22 = vrot.slane %v21, 1
  %v23 = vadd.f32 %v21, %v22
  %vm26 = vcmask 1041409
  %v27 = vsel %vm26, %v23, %v17
  %29 = vst [vmem:[%s1] sm:$0x3] %v27
  // Predicated region
  $region6: #{gradient_penalty_from_grad.1} parent=0 // pred_check
    _
  $region7: #{gradient_penalty_from_grad.1} parent=0 // pred_check_branch
    %31 = sbr.rel (0) target = $region9
  $region8: #{gradient_penalty_from_grad.1} parent=0 // pred_region
    _
  $region9: #{gradient_penalty_from_grad.1} parent=0 // pred_fallthru
    _
  // Predicated region
  $region10: #{gradient_penalty_from_grad.1} parent=0 // pred_check
    _
  $region11: #{gradient_penalty_from_grad.1} parent=0 // pred_check_branch
    %33 = sbr.rel (0) target = $region13
  $region12: #{gradient_penalty_from_grad.1} parent=0 // pred_region
    _
  $region13: #{gradient_penalty_from_grad.1} parent=0 // pred_fallthru
    _

</llo_original>
